<compile_context>
chip_gen: v6e
topology: v6e:2x2x1
jax: 0.10.0
libtpu: 0.0.40
codegen_flags: <defaults>
</compile_context>

<pallas_src>
import functools

import jax
import jax.numpy as jnp
from jax.experimental import pallas as pl
from jax.experimental.pallas import tpu as pltpu

LANES = 128
SUBLANES = 8
MAX_TILE_M = 2048  # 2048x128 f32 = 1 MiB per input block (2 inputs x 2 bufs = 4 MiB).


def _focal_partial_kernel(pred_ref, gt_ref, out_ref, *, tile_m, nb_inner, m_valid):
    """Accumulates [loss_sum, num_pos] partials for one parallel slice.

    pred_ref, gt_ref: (tile_m, 128) input blocks in their native dtype.
    out_ref: (1, 2, 8, 128) float32 block, resident across the inner axis.
    """
    p = pl.program_id(0)          # parallel slice
    i = pl.program_id(1)          # reduction step within the slice

    @pl.when(i == 0)
    def _init():
        out_ref[...] = jnp.zeros_like(out_ref)

    blk = p * nb_inner + i
    valid_rows = m_valid - blk * tile_m   # rows < valid_rows hold real data

    pred_full = pred_ref[...].astype(jnp.float32)
    gt_full = gt_ref[...].astype(jnp.float32)

    def accumulate(pred, gt):
        # pos / neg are mutually exclusive; anything else (gt > 1, masked lanes)
        # is neutralised through the log argument (log(1) = 0), not the weight.
        pos = gt == 1.0
        neg = gt < 1.0
        one_m_pred = 1.0 - pred
        a = jnp.where(pos, one_m_pred, pred)   # base of the squared weight
        d = 1.0 - gt
        d2 = d * d
        s = jnp.where(pos, 1.0, d2 * d2)       # (1-gt)^4 for neg, 1 for pos
        w = (a * a) * s
        # Single log per element: argument selected so inactive lanes get
        # log(1) = 0 and thus contribute exactly zero (w is always finite).
        x = jnp.where(pos, pred, jnp.where(neg, one_m_pred, 1.0))
        contrib = jnp.log(x) * w
        posf = pos.astype(jnp.float32)

        # Fold rows down to the (8, 128) vreg shape with plain VPU adds; the
        # cross-lane reduction happens once, outside the kernel.
        g = tile_m // SUBLANES
        loss_tile = jnp.sum(contrib.reshape(g, SUBLANES, LANES), axis=0)
        npos_tile = jnp.sum(posf.reshape(g, SUBLANES, LANES), axis=0)
        out_ref[0, 0, :, :] = out_ref[0, 0, :, :] + loss_tile
        out_ref[0, 1, :, :] = out_ref[0, 1, :, :] + npos_tile

    # Fast path: block fully inside the valid rows -> no masking work at all.
    @pl.when(valid_rows >= tile_m)
    def _full_block():
        accumulate(pred_full, gt_full)

    # Tail / duplicated blocks: mask invalid rows to neutral, finite values
    # (gt=2 -> neither pos nor neg; pred=0.5 keeps every product finite even if
    # the un-DMA'd part of the buffer contains garbage / NaN bits).
    @pl.when(valid_rows < tile_m)
    def _tail_block():
        row = jax.lax.broadcasted_iota(jnp.int32, (tile_m, LANES), 0)
        mask = row < valid_rows
        accumulate(jnp.where(mask, pred_full, 0.5),
                   jnp.where(mask, gt_full, 2.0))


def focal_loss(pred, gt):
    """CornerNet modified focal loss.  pred, gt: same-shape arrays, pred in (0,1)."""
    assert pred.shape == gt.shape
    total = pred.size
    if total == 0:
        return jnp.float32(0.0)

    # Flatten row-major; keep the native dtype so bf16 inputs only pay bf16 HBM
    # traffic (the cast to f32 happens in VMEM inside the kernel).
    pred_flat = jnp.reshape(pred, (-1,))
    gt_flat = jnp.reshape(gt, (-1,))

    # Only pad (by < 128 neutral elements) when total is not a multiple of 128,
    # which is needed for the (m, 128) reshape.  gt=2.0 -> neither pos nor neg;
    # pred=0.5 -> finite log; contribution is exactly zero.
    pad = (-total) % LANES
    if pad:
        pred_flat = jnp.concatenate(
            [pred_flat, jnp.full((pad,), 0.5, pred_flat.dtype)])
        gt_flat = jnp.concatenate(
            [gt_flat, jnp.full((pad,), 2.0, gt_flat.dtype)])
    m = (total + pad) // LANES
    pred2d = pred_flat.reshape(m, LANES)
    gt2d = gt_flat.reshape(m, LANES)

    # Fixed large row tile (mem-bound kernel); sublane granularity per dtype so
    # the block satisfies the (8,128)/(16,128)/(32,128) layout minimums.
    itemsize = jnp.dtype(pred.dtype).itemsize
    sub = {4: SUBLANES, 2: 16, 1: 32}.get(itemsize, SUBLANES)
    tile_m = min(MAX_TILE_M, ((m + sub - 1) // sub) * sub)
    nb_total = pl.cdiv(m, tile_m)

    # Leading "parallel" axis: megacore split on v7x, harmless 1-core loop else.
    n_par = 2 if nb_total >= 2 else 1
    nb_inner = pl.cdiv(nb_total, n_par)

    def in_index(pi, ii):
        # Clamp so duplicated tail blocks never DMA past the array; the kernel
        # masks them via the (unclamped) valid-row count.
        blk = pi * nb_inner + ii
        return (jnp.minimum(blk, nb_total - 1), 0)

    kernel = functools.partial(
        _focal_partial_kernel, tile_m=tile_m, nb_inner=nb_inner, m_valid=m)

    partials = pl.pallas_call(
        kernel,
        out_shape=jax.ShapeDtypeStruct((n_par, 2, SUBLANES, LANES), jnp.float32),
        grid_spec=pltpu.PrefetchScalarGridSpec(
            num_scalar_prefetch=0,
            grid=(n_par, nb_inner),
            in_specs=[
                pl.BlockSpec((tile_m, LANES), in_index),
                pl.BlockSpec((tile_m, LANES), in_index),
            ],
            out_specs=pl.BlockSpec((1, 2, SUBLANES, LANES),
                                   lambda pi, ii: (pi, 0, 0, 0)),
        ),
        compiler_params=pltpu.CompilerParams(
            dimension_semantics=("parallel", "arbitrary"),
            vmem_limit_bytes=32 * 1024 * 1024),
    )(pred2d, gt2d)

    # Tiny final reduction + the num_pos branch in plain JAX (scalar glue).
    loss_sum = jnp.sum(partials[:, 0])
    num_pos = jnp.sum(partials[:, 1])
    # pos_loss is identically 0 when num_pos == 0, so -loss_sum == -neg_loss then.
    return jnp.where(num_pos == 0, -loss_sum,
                     -loss_sum / jnp.maximum(num_pos, 1.0))


def _reference_focal_loss(pred, gt):
    pred = pred.astype(jnp.float32)
    gt = gt.astype(jnp.float32)
    pos_inds = (gt == 1.0).astype(jnp.float32)
    neg_inds = (gt < 1.0).astype(jnp.float32)
    neg_weights = (1.0 - gt) ** 4
    pos_loss = jnp.log(pred) * (1.0 - pred) ** 2 * pos_inds
    neg_loss = jnp.log(1.0 - pred) * pred ** 2 * neg_weights * neg_inds
    num_pos = pos_inds.sum()
    pos_loss = pos_loss.sum()
    neg_loss = neg_loss.sum()
    return jnp.where(num_pos == 0, -neg_loss,
                     -(pos_loss + neg_loss) / jnp.maximum(num_pos, 1.0))


def _make_inputs(shape, dtype, with_centers, seed):
    key = jax.random.PRNGKey(seed)
    k1, k2, k3 = jax.random.split(key, 3)
    pred = jax.nn.sigmoid(jax.random.normal(k1, shape, jnp.float32)).astype(dtype)
    gt_soft = jax.random.uniform(k2, shape, jnp.float32, 0.0, 0.99)
    if with_centers:
        centers = (jax.random.uniform(k3, shape) > 0.98).astype(jnp.float32)
        gt = jnp.where(centers == 1.0, 1.0, gt_soft)
    else:
        gt = gt_soft
    return pred, gt.astype(dtype)


def _check(shape, dtype=jnp.float32, with_centers=True, seed=0):
    pred, gt = _make_inputs(shape, dtype, with_centers, seed)
    loss = jax.block_until_ready(focal_loss(pred, gt))
    ref = jax.block_until_ready(_reference_focal_loss(pred, gt))
    assert jnp.allclose(loss, ref, rtol=1e-4, atol=1e-5), (shape, dtype, loss, ref)


if __name__ == "__main__":
    # Main case: same NCHW convention and small shape as the PyTorch module.
    _check((2, 4, 16, 16), jnp.float32, with_centers=True, seed=0)
    # num_pos == 0 branch.
    _check((2, 4, 16, 16), jnp.float32, with_centers=False, seed=1)
    # Ragged size: total % 128 != 0 (tiny neutral pad) + tail-row masking.
    _check((2, 3, 25, 31), jnp.float32, with_centers=True, seed=2)
    # Multi-block grid, full-block fast path + 2-way parallel (megacore) split.
    _check((4, 8, 128, 128), jnp.float32, with_centers=True, seed=3)
    # Odd number of blocks: exercises the partial edge block and the clamped
    # duplicated block (fully masked) at the full 2048-row tile size.
    _check((5, 8, 128, 128), jnp.float32, with_centers=True, seed=4)
    # Native bf16 inputs: bf16 HBM traffic, cast to f32 inside the kernel.
    _check((2, 4, 16, 16), jnp.bfloat16, with_centers=True, seed=5)

    print("KERNEL_OK")
</pallas_src>

<mosaic_0001>
module attributes {stable_mosaic.version = 11 : i64} {
  func.func @_focal_partial_kernel(%arg0: i32, %arg1: i32, %arg2: memref<16x128xf32, #tpu.memory_space<vmem>>, %arg3: memref<16x128xf32, #tpu.memory_space<vmem>>, %arg4: memref<1x2x8x128xf32, #tpu.memory_space<vmem>>) attributes {dimension_semantics = [#tpu.dimension_semantics<parallel>, #tpu.dimension_semantics<arbitrary>], iteration_bounds = array<i64: 1, 1>, scalar_prefetch = 0 : i64, scratch_operands = 0 : i64, tpu.core_type = #tpu.core_type<tc>, window_params = [{transform_indices = @transform_0, window_bounds = array<i64: 16, 128>}, {transform_indices = @transform_1, window_bounds = array<i64: 16, 128>}, {transform_indices = @transform_2, window_bounds = array<i64: 1, 2, 8, 128>}]} {
    %c0_i32 = arith.constant 0 : i32
    %0 = arith.cmpi eq, %arg1, %c0_i32 : i32
    %1 = arith.extui %0 : i1 to i32
    %c0_i32_0 = arith.constant 0 : i32
    %2 = arith.cmpi ne, %1, %c0_i32_0 : i32
    scf.if %2 {
      %cst = arith.constant 0.000000e+00 : f32
      %15 = vector.broadcast %cst : f32 to vector<1x2x8x128xf32>
      %c0_9 = arith.constant 0 : index
      %c0_10 = arith.constant 0 : index
      %c0_11 = arith.constant 0 : index
      %c0_12 = arith.constant 0 : index
      %16 = vector.load %arg4[%c0_9, %c0_10, %c0_11, %c0_12] : memref<1x2x8x128xf32, #tpu.memory_space<vmem>>, vector<1x2x8x128xf32>
      tpu.vector_store %arg4[%c0_9, %c0_10, %c0_11, %c0_12], %15 {strides = array<i32>} : memref<1x2x8x128xf32, #tpu.memory_space<vmem>>, vector<1x2x8x128xf32>,
    } else {
    }
    %c1_i32 = arith.constant 1 : i32
    %3 = arith.muli %arg0, %c1_i32 : i32
    %4 = arith.addi %3, %arg1 : i32
    %c16_i32 = arith.constant 16 : i32
    %5 = arith.muli %4, %c16_i32 : i32
    %c16_i32_1 = arith.constant 16 : i32
    %6 = arith.subi %c16_i32_1, %5 : i32
    %c0 = arith.constant 0 : index
    %c0_2 = arith.constant 0 : index
    %7 = vector.load %arg2[%c0, %c0_2] : memref<16x128xf32, #tpu.memory_space<vmem>>, vector<16x128xf32>
    %c0_3 = arith.constant 0 : index
    %c0_4 = arith.constant 0 : index
    %8 = vector.load %arg3[%c0_3, %c0_4] : memref<16x128xf32, #tpu.memory_space<vmem>>, vector<16x128xf32>
    %c16_i32_5 = arith.constant 16 : i32
    %9 = arith.cmpi sge, %6, %c16_i32_5 : i32
    %10 = arith.extui %9 : i1 to i32
    %c0_i32_6 = arith.constant 0 : i32
    %11 = arith.cmpi ne, %10, %c0_i32_6 : i32
    scf.if %11 {
      %cst = arith.constant 1.000000e+00 : f32
      %15 = vector.broadcast %cst : f32 to vector<16x128xf32>
      %16 = arith.cmpf oeq, %8, %15 : vector<16x128xf32>
      %cst_9 = arith.constant 1.000000e+00 : f32
      %17 = vector.broadcast %cst_9 : f32 to vector<16x128xf32>
      %18 = arith.cmpf olt, %8, %17 : vector<16x128xf32>
      %cst_10 = arith.constant 1.000000e+00 : f32
      %19 = vector.broadcast %cst_10 : f32 to vector<16x128xf32>
      %20 = arith.subf %19, %7 : vector<16x128xf32>
      %21 = arith.select %16, %20, %7 : vector<16x128xi1>, vector<16x128xf32>
      %cst_11 = arith.constant 1.000000e+00 : f32
      %22 = vector.broadcast %cst_11 : f32 to vector<16x128xf32>
      %23 = arith.subf %22, %8 : vector<16x128xf32>
      %24 = arith.mulf %23, %23 : vector<16x128xf32>
      %25 = arith.mulf %24, %24 : vector<16x128xf32>
      %cst_12 = arith.constant 1.000000e+00 : f32
      %26 = vector.broadcast %cst_12 : f32 to vector<16x128xf32>
      %27 = arith.select %16, %26, %25 : vector<16x128xi1>, vector<16x128xf32>
      %28 = arith.mulf %21, %21 : vector<16x128xf32>
      %29 = arith.mulf %28, %27 : vector<16x128xf32>
      %cst_13 = arith.constant 1.000000e+00 : f32
      %30 = vector.broadcast %cst_13 : f32 to vector<16x128xf32>
      %31 = arith.select %18, %20, %30 : vector<16x128xi1>, vector<16x128xf32>
      %32 = arith.select %16, %7, %31 : vector<16x128xi1>, vector<16x128xf32>
      %33 = math.log %32 : vector<16x128xf32>
      %34 = arith.mulf %33, %29 : vector<16x128xf32>
      %35 = arith.extui %16 : vector<16x128xi1> to vector<16x128xi32>
      %36 = arith.sitofp %35 : vector<16x128xi32> to vector<16x128xf32>
      %37 = vector.shape_cast %34 : vector<16x128xf32> to vector<2x8x128xf32>
      %cst_14 = arith.constant dense<0.000000e+00> : vector<8x128xf32>
      %38 = vector.multi_reduction <add>, %37, %cst_14 [0] : vector<2x8x128xf32> to vector<8x128xf32>
      %39 = vector.shape_cast %36 : vector<16x128xf32> to vector<2x8x128xf32>
      %cst_15 = arith.constant dense<0.000000e+00> : vector<8x128xf32>
      %40 = vector.multi_reduction <add>, %39, %cst_15 [0] : vector<2x8x128xf32> to vector<8x128xf32>
      %c0_16 = arith.constant 0 : index
      %c0_17 = arith.constant 0 : index
      %c0_18 = arith.constant 0 : index
      %c0_19 = arith.constant 0 : index
      %41 = vector.load %arg4[%c0_16, %c0_17, %c0_18, %c0_19] : memref<1x2x8x128xf32, #tpu.memory_space<vmem>>, vector<1x1x8x128xf32>
      %42 = vector.shape_cast %41 : vector<1x1x8x128xf32> to vector<8x128xf32>
      %43 = arith.addf %42, %38 : vector<8x128xf32>
      %c0_20 = arith.constant 0 : index
      %c0_21 = arith.constant 0 : index
      %c0_22 = arith.constant 0 : index
      %c0_23 = arith.constant 0 : index
      %44 = vector.load %arg4[%c0_20, %c0_21, %c0_22, %c0_23] : memref<1x2x8x128xf32, #tpu.memory_space<vmem>>, vector<1x1x8x128xf32>
      %45 = vector.shape_cast %44 : vector<1x1x8x128xf32> to vector<8x128xf32>
      %46 = vector.shape_cast %43 : vector<8x128xf32> to vector<1x1x8x128xf32>
      tpu.vector_store %arg4[%c0_20, %c0_21, %c0_22, %c0_23], %46 {strides = array<i32>} : memref<1x2x8x128xf32, #tpu.memory_space<vmem>>, vector<1x1x8x128xf32>,
      %c0_24 = arith.constant 0 : index
      %c1 = arith.constant 1 : index
      %c0_25 = arith.constant 0 : index
      %c0_26 = arith.constant 0 : index
      %47 = vector.load %arg4[%c0_24, %c1, %c0_25, %c0_26] : memref<1x2x8x128xf32, #tpu.memory_space<vmem>>, vector<1x1x8x128xf32>
      %48 = vector.shape_cast %47 : vector<1x1x8x128xf32> to vector<8x128xf32>
      %49 = arith.addf %48, %40 : vector<8x128xf32>
      %c0_27 = arith.constant 0 : index
      %c1_28 = arith.constant 1 : index
      %c0_29 = arith.constant 0 : index
      %c0_30 = arith.constant 0 : index
      %50 = vector.load %arg4[%c0_27, %c1_28, %c0_29, %c0_30] : memref<1x2x8x128xf32, #tpu.memory_space<vmem>>, vector<1x1x8x128xf32>
      %51 = vector.shape_cast %50 : vector<1x1x8x128xf32> to vector<8x128xf32>
      %52 = vector.shape_cast %49 : vector<8x128xf32> to vector<1x1x8x128xf32>
      tpu.vector_store %arg4[%c0_27, %c1_28, %c0_29, %c0_30], %52 {strides = array<i32>} : memref<1x2x8x128xf32, #tpu.memory_space<vmem>>, vector<1x1x8x128xf32>,
    } else {
    }
    %c16_i32_7 = arith.constant 16 : i32
    %12 = arith.cmpi slt, %6, %c16_i32_7 : i32
    %13 = arith.extui %12 : i1 to i32
    %c0_i32_8 = arith.constant 0 : i32
    %14 = arith.cmpi ne, %13, %c0_i32_8 : i32
    scf.if %14 {
      %15 = tpu.iota {dimensions = array<i32: 0>} : vector<16x128xi32>
      %16 = vector.broadcast %6 : i32 to vector<16x128xi32>
      %17 = arith.cmpi slt, %15, %16 : vector<16x128xi32>
      %cst = arith.constant 5.000000e-01 : f32
      %18 = vector.broadcast %cst : f32 to vector<16x128xf32>
      %19 = arith.select %17, %7, %18 : vector<16x128xi1>, vector<16x128xf32>
      %cst_9 = arith.constant 2.000000e+00 : f32
      %20 = vector.broadcast %cst_9 : f32 to vector<16x128xf32>
      %21 = arith.select %17, %8, %20 : vector<16x128xi1>, vector<16x128xf32>
      %cst_10 = arith.constant 1.000000e+00 : f32
      %22 = vector.broadcast %cst_10 : f32 to vector<16x128xf32>
      %23 = arith.cmpf oeq, %21, %22 : vector<16x128xf32>
      %cst_11 = arith.constant 1.000000e+00 : f32
      %24 = vector.broadcast %cst_11 : f32 to vector<16x128xf32>
      %25 = arith.cmpf olt, %21, %24 : vector<16x128xf32>
      %cst_12 = arith.constant 1.000000e+00 : f32
      %26 = vector.broadcast %cst_12 : f32 to vector<16x128xf32>
      %27 = arith.subf %26, %19 : vector<16x128xf32>
      %28 = arith.select %23, %27, %19 : vector<16x128xi1>, vector<16x128xf32>
      %cst_13 = arith.constant 1.000000e+00 : f32
      %29 = vector.broadcast %cst_13 : f32 to vector<16x128xf32>
      %30 = arith.subf %29, %21 : vector<16x128xf32>
      %31 = arith.mulf %30, %30 : vector<16x128xf32>
      %32 = arith.mulf %31, %31 : vector<16x128xf32>
      %cst_14 = arith.constant 1.000000e+00 : f32
      %33 = vector.broadcast %cst_14 : f32 to vector<16x128xf32>
      %34 = arith.select %23, %33, %32 : vector<16x128xi1>, vector<16x128xf32>
      %35 = arith.mulf %28, %28 : vector<16x128xf32>
      %36 = arith.mulf %35, %34 : vector<16x128xf32>
      %cst_15 = arith.constant 1.000000e+00 : f32
      %37 = vector.broadcast %cst_15 : f32 to vector<16x128xf32>
      %38 = arith.select %25, %27, %37 : vector<16x128xi1>, vector<16x128xf32>
      %39 = arith.select %23, %19, %38 : vector<16x128xi1>, vector<16x128xf32>
      %40 = math.log %39 : vector<16x128xf32>
      %41 = arith.mulf %40, %36 : vector<16x128xf32>
      %42 = arith.extui %23 : vector<16x128xi1> to vector<16x128xi32>
      %43 = arith.sitofp %42 : vector<16x128xi32> to vector<16x128xf32>
      %44 = vector.shape_cast %41 : vector<16x128xf32> to vector<2x8x128xf32>
      %cst_16 = arith.constant dense<0.000000e+00> : vector<8x128xf32>
      %45 = vector.multi_reduction <add>, %44, %cst_16 [0] : vector<2x8x128xf32> to vector<8x128xf32>
      %46 = vector.shape_cast %43 : vector<16x128xf32> to vector<2x8x128xf32>
      %cst_17 = arith.constant dense<0.000000e+00> : vector<8x128xf32>
      %47 = vector.multi_reduction <add>, %46, %cst_17 [0] : vector<2x8x128xf32> to vector<8x128xf32>
      %c0_18 = arith.constant 0 : index
      %c0_19 = arith.constant 0 : index
      %c0_20 = arith.constant 0 : index
      %c0_21 = arith.constant 0 : index
      %48 = vector.load %arg4[%c0_18, %c0_19, %c0_20, %c0_21] : memref<1x2x8x128xf32, #tpu.memory_space<vmem>>, vector<1x1x8x128xf32>
      %49 = vector.shape_cast %48 : vector<1x1x8x128xf32> to vector<8x128xf32>
      %50 = arith.addf %49, %45 : vector<8x128xf32>
      %c0_22 = arith.constant 0 : index
      %c0_23 = arith.constant 0 : index
      %c0_24 = arith.constant 0 : index
      %c0_25 = arith.constant 0 : index
      %51 = vector.load %arg4[%c0_22, %c0_23, %c0_24, %c0_25] : memref<1x2x8x128xf32, #tpu.memory_space<vmem>>, vector<1x1x8x128xf32>
      %52 = vector.shape_cast %51 : vector<1x1x8x128xf32> to vector<8x128xf32>
      %53 = vector.shape_cast %50 : vector<8x128xf32> to vector<1x1x8x128xf32>
      tpu.vector_store %arg4[%c0_22, %c0_23, %c0_24, %c0_25], %53 {strides = array<i32>} : memref<1x2x8x128xf32, #tpu.memory_space<vmem>>, vector<1x1x8x128xf32>,
      %c0_26 = arith.constant 0 : index
      %c1 = arith.constant 1 : index
      %c0_27 = arith.constant 0 : index
      %c0_28 = arith.constant 0 : index
      %54 = vector.load %arg4[%c0_26, %c1, %c0_27, %c0_28] : memref<1x2x8x128xf32, #tpu.memory_space<vmem>>, vector<1x1x8x128xf32>
      %55 = vector.shape_cast %54 : vector<1x1x8x128xf32> to vector<8x128xf32>
      %56 = arith.addf %55, %47 : vector<8x128xf32>
      %c0_29 = arith.constant 0 : index
      %c1_30 = arith.constant 1 : index
      %c0_31 = arith.constant 0 : index
      %c0_32 = arith.constant 0 : index
      %57 = vector.load %arg4[%c0_29, %c1_30, %c0_31, %c0_32] : memref<1x2x8x128xf32, #tpu.memory_space<vmem>>, vector<1x1x8x128xf32>
      %58 = vector.shape_cast %57 : vector<1x1x8x128xf32> to vector<8x128xf32>
      %59 = vector.shape_cast %56 : vector<8x128xf32> to vector<1x1x8x128xf32>
      tpu.vector_store %arg4[%c0_29, %c1_30, %c0_31, %c0_32], %59 {strides = array<i32>} : memref<1x2x8x128xf32, #tpu.memory_space<vmem>>, vector<1x1x8x128xf32>,
    } else {
    }
    return
  }
  func.func @transform_0(%arg0: i32, %arg1: i32) -> (i32, i32) {
    %c1_i32 = arith.constant 1 : i32
    %0 = arith.muli %arg0, %c1_i32 : i32
    %1 = arith.addi %0, %arg1 : i32
    %c0_i32 = arith.constant 0 : i32
    %2 = arith.minsi %1, %c0_i32 : i32
    %c0_i32_0 = arith.constant 0 : i32
    %c0_i32_1 = arith.constant 0 : i32
    return %2, %c0_i32_0 : i32, i32
  }
  func.func @transform_1(%arg0: i32, %arg1: i32) -> (i32, i32) {
    %c1_i32 = arith.constant 1 : i32
    %0 = arith.muli %arg0, %c1_i32 : i32
    %1 = arith.addi %0, %arg1 : i32
    %c0_i32 = arith.constant 0 : i32
    %2 = arith.minsi %1, %c0_i32 : i32
    %c0_i32_0 = arith.constant 0 : i32
    %c0_i32_1 = arith.constant 0 : i32
    return %2, %c0_i32_0 : i32, i32
  }
  func.func @transform_2(%arg0: i32, %arg1: i32) -> (i32, i32, i32, i32) {
    %c0_i32 = arith.constant 0 : i32
    %c0_i32_0 = arith.constant 0 : i32
    %c0_i32_1 = arith.constant 0 : i32
    %c0_i32_2 = arith.constant 0 : i32
    return %arg0, %c0_i32, %c0_i32_0, %c0_i32_1 : i32, i32, i32, i32
  }
}

</mosaic_0001>

<llo_original>
// kernel: tpu_custom_call.1
$region0: #{tpu_custom_call.1}
  #allocation0 [shape = 'u32[]', space=smem, size = 0x4, offset = 0x4, fixed_abs, tag = 'smem constant byte address 0x4 - core index']
  #allocation1 [shape = 'u32[144,128]{1,0:T(1,128)}', space=vmem, size = 0x12000, scoped, tag = 'internal scratch']
  %s0 = inlined_call_operand.hbm [shape: f32[16,128], index: 0, kind: input, shape index: {}]
  %s1 = inlined_call_operand.hbm [shape: f32[16,128], index: 1, kind: input, shape index: {}]
  %s2 = inlined_call_operand.hbm [shape: f32[1,2,8,128], index: 2, kind: output, shape index: {}]
  %s3 = sld [smem:[#allocation0]]
  $region38: #{tpu_custom_call.1} parent=0
    _
  %s5 = ssub.s32 1, %s3
  %s6 = scalar_select 0, %s5, %s3
  $region1: #{tpu_custom_call.1} parent=0
    #allocation2 [shape = 'u8[8192]{0}', space=vmem, size = 0x2000, scoped, tag = 'input window, operand 0, single buffered']
    #allocation3 [shape = 's32[1]{0}', space=sflag, size = 0x4, scoped, tag = 'scoped memory for tpu_custom_call.1']
    #allocation4 [shape = 's32[1]{0}', space=sflag, size = 0x4, scoped, tag = 'scoped memory for tpu_custom_call.1']
    #allocation5 [shape = 'u8[8192]{0}', space=vmem, size = 0x2000, scoped, tag = 'input window, operand 1, single buffered']
    #allocation6 [shape = 's32[1]{0}', space=sflag, size = 0x4, scoped, tag = 'scoped memory for tpu_custom_call.1']
    #allocation7 [shape = 'u8[8192]{0}', space=vmem, size = 0x2000, scoped, tag = 'output window, operand 0, single buffered']
    %7 = vsyncpa [#allocation3], 0
    %8 = vsyncpa [#allocation6], 0
    %9 = vsyncpa [#allocation4], 0
    // Predicated region
    $region2: #{tpu_custom_call.1} parent=1 // pred_check
      _
    $region3: #{tpu_custom_call.1} parent=1 // pred_check_branch
      %11 = sbr.rel (0) target = $region5
    $region4: #{tpu_custom_call.1} parent=1 // pred_region
      %s12 = sadd.s32 0, 0
      %p13 = scmp.lt.s32.totalorder %s12, 0
      %s14 = scalar_select %p13, %s12, 0
      %s15 = smul.u32 2, %s14
      %s17 = ssub.s32 256, 256
      %18 = vsyncadd [#allocation3], %s17
      %s19 = smul.addr %s15, 128
      %s20 = scalar_lea.hbm %s0, %s19
      %s21 = sshll.u32 [#allocation2], 4
      %s22 = int_to_ptr.vmem [resolvable:$true] %s21
      %27 = dma.hbm_to_vmem [thread:$0]  %s20, 256, %s22, [#allocation3], 128, 128, 8
    $region5: #{tpu_custom_call.1} parent=1 // pred_fallthru
      _
    // Predicated region
    $region6: #{tpu_custom_call.1} parent=1 // pred_check
      _
    $region7: #{tpu_custom_call.1} parent=1 // pred_check_branch
      %29 = sbr.rel (0) target = $region9
    $region8: #{tpu_custom_call.1} parent=1 // pred_region
      %s30 = sadd.s32 0, 0
      %p31 = scmp.lt.s32.totalorder %s30, 0
      %s32 = scalar_select %p31, %s30, 0
      %s33 = smul.u32 2, %s32
      %s35 = ssub.s32 256, 256
      %36 = vsyncadd [#allocation6], %s35
      %s37 = smul.addr %s33, 128
      %s38 = scalar_lea.hbm %s1, %s37
      %s39 = sshll.u32 [#allocation5], 4
      %s40 = int_to_ptr.vmem [resolvable:$true] %s39
      %45 = dma.hbm_to_vmem [thread:$0]  %s38, 256, %s40, [#allocation6], 128, 128, 8
    $region9: #{tpu_custom_call.1} parent=1 // pred_fallthru
      _
    // Predicated region
    $region10: #{tpu_custom_call.1} parent=1 // pred_check
      _
    $region11: #{tpu_custom_call.1} parent=1 // pred_check_branch
      %47 = sbr.rel (0) target = $region13
    $region12: #{tpu_custom_call.1} parent=1 // pred_region
      %48 = dma.done [#allocation3], 256
    $region13: #{tpu_custom_call.1} parent=1 // pred_fallthru
      _
    // Predicated region
    $region14: #{tpu_custom_call.1} parent=1 // pred_check
      _
    $region15: #{tpu_custom_call.1} parent=1 // pred_check_branch
      %50 = sbr.rel (0) target = $region17
    $region16: #{tpu_custom_call.1} parent=1 // pred_region
      %51 = dma.done [#allocation6], 256
    $region17: #{tpu_custom_call.1} parent=1 // pred_fallthru
      _
    %s52 = sadd.s32 0, 0
    %p53 = scmp.lt.s32.totalorder %s52, 0
    %s54 = scalar_select %p53, %s52, 0
    %s55 = smul.u32 2, %s54
    %s56 = sadd.s32 0, 0
    %p57 = scmp.lt.s32.totalorder %s56, 0
    %s58 = scalar_select %p57, %s56, 0
    %s59 = smul.u32 2, %s58
    %p60 = scmp.eq.s32.totalorder 0, 0
    // Predicated region
    $region18: #{tpu_custom_call.1} parent=1 // pred_check
      %p61 = pneg %p60
    $region19: #{tpu_custom_call.1} parent=1 // pred_check_branch
      %63 = sbr.rel (%p61) target = $region21
    $region20: #{tpu_custom_call.1} parent=1 // pred_region
      %64 = vst [vmem:[#allocation7] sm:$0xff] 0.0
      %65 = vst [vmem:[#allocation7 + $0x8] sm:$0xff] 0.0
    $region21: #{tpu_custom_call.1} parent=1 // pred_fallthru
      _
    %s66 = sadd.s32 0, 0
    %s67 = smul.u32 %s66, 16
    %s68 = ssub.s32 16, %s67
    %v69 = vld [vmem:[#allocation2] sm:$0xff]
    %v70 = vld [vmem:[#allocation2 + $0x8] sm:$0xff]
    %v71 = vld [vmem:[#allocation5] sm:$0xff]
    %v72 = vld [vmem:[#allocation5 + $0x8] sm:$0xff]
    %p73 = scmp.ge.s32.totalorder %s68, 16
    // Predicated region
    $region22: #{tpu_custom_call.1} parent=1 // pred_check
      %p74 = pneg %p73
    $region23: #{tpu_custom_call.1} parent=1 // pred_check_branch
      %76 = sbr.rel (%p74) target = $region25
    $region24: #{tpu_custom_call.1} parent=1 // pred_region
      %vm77 = vcmp.eq.f32.partialorder %v71, 1.0
      %vm78 = vcmp.eq.f32.partialorder %v72, 1.0
      %vm79 = vcmp.lt.f32.partialorder %v71, 1.0
      %vm80 = vcmp.lt.f32.partialorder %v72, 1.0
      %v81 = vsub.f32 1.0, %v69
      %v82 = vsub.f32 1.0, %v70
      %v83 = vsel %vm77, %v81, %v69
      %v84 = vsel %vm78, %v82, %v70
      %v85 = vsub.f32 1.0, %v71
      %v86 = vsub.f32 1.0, %v72
      %v87 = vmul.f32 %v85, %v85
      %v88 = vmul.f32 %v86, %v86
      %v89 = vmul.f32 %v87, %v87
      %v90 = vmul.f32 %v88, %v88
      %v91 = vsel %vm77, 1.0, %v89
      %v92 = vsel %vm78, 1.0, %v90
      %v93 = vmul.f32 %v83, %v83
      %v94 = vmul.f32 %v84, %v84
      %v95 = vmul.f32 %v93, %v91
      %v96 = vmul.f32 %v94, %v92
      %v97 = vsel %vm79, %v81, 1.0
      %v98 = vsel %vm80, %v82, 1.0
      %v99 = vsel %vm77, %v69, %v97
      %v100 = vsel %vm78, %v70, %v98
      %v101 = vlog2.pop %v99
      %v102 = vmul.f32 %v101, 0.6931472
      %v103 = vlog2.pop %v100
      %v104 = vmul.f32 %v103, 0.6931472
      %v105 = vmul.f32 %v102, %v95
      %v106 = vmul.f32 %v104, %v96
      %v107 = vsel %vm77, 1, 0
      %v108 = vsel %vm78, 1, 0
      %v109 = vcvt.s32.f32 %v107
      %v110 = vcvt.s32.f32 %v108
      %v111 = vadd.f32 %v105, %v106
      %v112 = vadd.f32 %v109, %v110
      %v113 = vld [vmem:[#allocation7] sm:$0xff]
      %v114 = vadd.f32 %v113, %v111
      %115 = vst [vmem:[#allocation7] sm:$0xff] %v114
      %s116 = scalar_lea.vmem [#allocation7], 8
      %v117 = vld [vmem:[%s116] sm:$0xff]
      %v118 = vadd.f32 %v117, %v112
      %119 = vst [vmem:[%s116] sm:$0xff] %v118
    $region25: #{tpu_custom_call.1} parent=1 // pred_fallthru
      _
    %p120 = scmp.lt.s32.totalorder %s68, 16
    // Predicated region
    $region26: #{tpu_custom_call.1} parent=1 // pred_check
      %p121 = pneg %p120
    $region27: #{tpu_custom_call.1} parent=1 // pred_check_branch
      %123 = sbr.rel (%p121) target = $region29
    $region28: #{tpu_custom_call.1} parent=1 // pred_region
      %v124 = vlaneseq
      %v125 = vshrl.u32 %v124, 7
      %v126 = vadd.s32 %v125, 8
      %v127 = vstv %s68
      %vm128 = vcmp.lt.s32.totalorder %v125, %v127
      %vm129 = vcmp.lt.s32.totalorder %v126, %v127
      %v130 = vsel %vm128, %v69, 0.5
      %v131 = vsel %vm129, %v70, 0.5
      %v132 = vsel %vm128, %v71, 2.0
      %v133 = vsel %vm129, %v72, 2.0
      %vm134 = vcmp.eq.f32.partialorder %v132, 1.0
      %vm135 = vcmp.eq.f32.partialorder %v133, 1.0
      %vm136 = vcmp.lt.f32.partialorder %v132, 1.0
      %vm137 = vcmp.lt.f32.partialorder %v133, 1.0
      %v138 = vsub.f32 1.0, %v130
      %v139 = vsub.f32 1.0, %v131
      %v140 = vsel %vm134, %v138, %v130
      %v141 = vsel %vm135, %v139, %v131
      %v142 = vsub.f32 1.0, %v132
      %v143 = vsub.f32 1.0, %v133
      %v144 = vmul.f32 %v142, %v142
      %v145 = vmul.f32 %v143, %v143
      %v146 = vmul.f32 %v144, %v144
      %v147 = vmul.f32 %v145, %v145
      %v148 = vsel %vm134, 1.0, %v146
      %v149 = vsel %vm135, 1.0, %v147
      %v150 = vmul.f32 %v140, %v140
      %v151 = vmul.f32 %v141, %v141
      %v152 = vmul.f32 %v150, %v148
      %v153 = vmul.f32 %v151, %v149
      %v154 = vsel %vm136, %v138, 1.0
      %v155 = vsel %vm137, %v139, 1.0
      %v156 = vsel %vm134, %v130, %v154
      %v157 = vsel %vm135, %v131, %v155
      %v158 = vlog2.pop %v156
      %v159 = vmul.f32 %v158, 0.6931472
      %v160 = vlog2.pop %v157
      %v161 = vmul.f32 %v160, 0.6931472
      %v162 = vmul.f32 %v159, %v152
      %v163 = vmul.f32 %v161, %v153
      %v164 = vsel %vm134, 1, 0
      %v165 = vsel %vm135, 1, 0
      %v166 = vcvt.s32.f32 %v164
      %v167 = vcvt.s32.f32 %v165
      %v168 = vadd.f32 %v162, %v163
      %v169 = vadd.f32 %v166, %v167
      %v170 = vld [vmem:[#allocation7] sm:$0xff]
      %v171 = vadd.f32 %v170, %v168
      %172 = vst [vmem:[#allocation7] sm:$0xff] %v171
      %s173 = scalar_lea.vmem [#allocation7], 8
      %v174 = vld [vmem:[%s173] sm:$0xff]
      %v175 = vadd.f32 %v174, %v169
      %176 = vst [vmem:[%s173] sm:$0xff] %v175
    $region29: #{tpu_custom_call.1} parent=1 // pred_fallthru
      _
    // Predicated region
    $region30: #{tpu_custom_call.1} parent=1 // pred_check
      _
    $region31: #{tpu_custom_call.1} parent=1 // pred_check_branch
      %178 = sbr.rel (0) target = $region33
    $region32: #{tpu_custom_call.1} parent=1 // pred_region
      %s180 = ssub.s32 256, 256
      %181 = vsyncadd [#allocation4], %s180
      %s182 = sshll.u32 [#allocation7], 4
      %s183 = int_to_ptr.vmem [resolvable:$true] %s182
      %188 = dma.vmem_to_hbm [thread:$0]  %s183, 256, %s2, [#allocation4], 128, 128, 8
    $region33: #{tpu_custom_call.1} parent=1 // pred_fallthru
      _
    // Predicated region
    $region34: #{tpu_custom_call.1} parent=1 // pred_check
      _
    $region35: #{tpu_custom_call.1} parent=1 // pred_check_branch
      %190 = sbr.rel (0) target = $region37
    $region36: #{tpu_custom_call.1} parent=1 // pred_region
      %191 = dma.done [#allocation4], 256
    $region37: #{tpu_custom_call.1} parent=1 // pred_fallthru
      _
    %192 = vsyncpa [#allocation3], 1
    %193 = vsyncpa [#allocation6], 1
    %194 = vsyncpa [#allocation4], 1

</llo_original>
